<compile_context>
chip_gen: v6e
topology: v6e:2x2x1
jax: 0.10.0
libtpu: 0.0.40
codegen_flags: <defaults>
</compile_context>

<pallas_src>
import jax
import jax.numpy as jnp
from jax.experimental import pallas as pl
from jax.experimental.pallas import tpu as pltpu


def _weekday_kernel(idx_ref, fused_ref, out_ref):
    # idx_ref:   (TN, 1)  int32   -- tile of flattened indices
    # fused_ref: (8, Dp)  float32 -- fused (embedding @ W^T + b) table, lane-padded
    # out_ref:   (TN, Dp) out_dtype
    tn = idx_ref.shape[0]
    nvoc = fused_ref.shape[0]           # 8
    idx = idx_ref[...]                  # (TN, 1)
    # Gather expressed as a tiny K=8 matmul: one-hot row pick is exact in f32 accumulate.
    iota = jax.lax.broadcasted_iota(jnp.int32, (tn, nvoc), 1)
    onehot = (iota == idx).astype(jnp.float32)                       # (TN, 8)
    out = jnp.dot(onehot, fused_ref[...], preferred_element_type=jnp.float32)
    out_ref[...] = out.astype(out_ref.dtype)


def weekday_embedding(x, emb_table, linear_w, linear_b, *,
                      tile_n=1024, out_dtype=jnp.float32):
    """x: int indices of shape (batch, seq), values in [0, 8).
    emb_table: (8, d_emb); linear_w: (d_model, d_emb) (PyTorch layout); linear_b: (d_model,).
    Returns (batch, seq, d_model) in `out_dtype` (float32 by default)."""
    batch, seq = x.shape
    n = batch * seq
    d_model = linear_w.shape[0]

    # --- Fuse Embedding + Linear into one (8, d_model) lookup table (trivial cost). ---
    fused = (emb_table.astype(jnp.float32) @ linear_w.astype(jnp.float32).T
             + linear_b.astype(jnp.float32)[None, :])                # (8, d_model)

    # --- Lane-dense output: pad d_model up to a multiple of 128. ---
    dpad = ((d_model + 127) // 128) * 128
    if dpad != d_model:
        fused = jnp.pad(fused, ((0, 0), (0, dpad - d_model)))

    # --- Tile over N; pad N so every tile is full (pad indices are 0 -> discarded rows). ---
    tn = min(tile_n, n)
    tn = ((tn + 7) // 8) * 8                                         # sublane-aligned tile
    n_pad = ((n + tn - 1) // tn) * tn
    idx = x.reshape(n).astype(jnp.int32)
    idx = jnp.pad(idx, (0, n_pad - n)).reshape(n_pad, 1)

    grid = (pl.cdiv(n_pad, tn),)
    out = pl.pallas_call(
        _weekday_kernel,
        out_shape=jax.ShapeDtypeStruct((n_pad, dpad), out_dtype),
        grid=grid,
        in_specs=[
            pl.BlockSpec((tn, 1), lambda i: (i, 0)),        # indices, tiled over N
            pl.BlockSpec((8, dpad), lambda i: (0, 0)),      # fused table, resident
        ],
        out_specs=pl.BlockSpec((tn, dpad), lambda i: (i, 0)),
        compiler_params=pltpu.CompilerParams(
            dimension_semantics=("parallel",)),             # dual-TC sharding on v7x
    )(idx, fused)

    return out[:n, :d_model].reshape(batch, seq, d_model)


if __name__ == "__main__":
    # Small deterministic setup consistent with the module's forward.
    batch, seq = 2, 8
    d_embedding, d_model = 32, 64

    key = jax.random.PRNGKey(0)
    k_idx, k_emb, k_w, k_b = jax.random.split(key, 4)

    # Indices in [0, 8) like nn.Embedding(8, d_embedding) expects.
    x = jax.random.randint(k_idx, (batch, seq), 0, 8, dtype=jnp.int32)

    # Deterministic parameter init (synthetic, not a checkpoint load).
    emb_table = jax.random.normal(k_emb, (8, d_embedding), dtype=jnp.float32)
    linear_w = jax.random.normal(k_w, (d_model, d_embedding), dtype=jnp.float32) * 0.1
    linear_b = jax.random.normal(k_b, (d_model,), dtype=jnp.float32) * 0.01

    out = weekday_embedding(x, emb_table, linear_w, linear_b)
    out = jax.block_until_ready(out)

    # Reference check in plain JAX (module semantics: fep_linear(embedding(x))).
    ref = emb_table[x] @ linear_w.T + linear_b
    assert out.shape == (batch, seq, d_model)
    assert jnp.allclose(out, ref, atol=1e-4, rtol=1e-4)

    print("KERNEL_OK")
</pallas_src>

<mosaic_0001>
module attributes {stable_mosaic.version = 11 : i64} {
  func.func @_weekday_kernel(%arg0: i32, %arg1: memref<16x1xi32, #tpu.memory_space<vmem>>, %arg2: memref<8x128xf32, #tpu.memory_space<vmem>>, %arg3: memref<16x128xf32, #tpu.memory_space<vmem>>) attributes {dimension_semantics = [#tpu.dimension_semantics<parallel>], iteration_bounds = array<i64: 1>, scalar_prefetch = 0 : i64, scratch_operands = 0 : i64, tpu.core_type = #tpu.core_type<tc>, window_params = [{transform_indices = @transform_0, window_bounds = array<i64: 16, 1>}, {pipeline_mode = #tpu.pipeline_mode<synchronous>, transform_indices = @transform_1, window_bounds = array<i64: 8, 128>}, {transform_indices = @transform_2, window_bounds = array<i64: 16, 128>}]} {
    %c0 = arith.constant 0 : index
    %c0_0 = arith.constant 0 : index
    %0 = vector.load %arg1[%c0, %c0_0] : memref<16x1xi32, #tpu.memory_space<vmem>>, vector<16x1xi32>
    %1 = tpu.iota {dimensions = array<i32: 1>} : vector<16x8xi32>
    %2 = vector.broadcast %0 : vector<16x1xi32> to vector<16x8xi32>
    %3 = arith.cmpi eq, %1, %2 : vector<16x8xi32>
    %4 = arith.extui %3 : vector<16x8xi1> to vector<16x8xi32>
    %5 = arith.sitofp %4 : vector<16x8xi32> to vector<16x8xf32>
    %c0_1 = arith.constant 0 : index
    %c0_2 = arith.constant 0 : index
    %6 = vector.load %arg2[%c0_1, %c0_2] : memref<8x128xf32, #tpu.memory_space<vmem>>, vector<8x128xf32>
    %cst = arith.constant dense<0.000000e+00> : vector<16x128xf32>
    %7 = tpu.matmul %5, %6, %cst {dimension_numbers = #tpu.dot_dimension_numbers<[1], [0], [0], [1], [0, 0, 1, 1], [], []>} : vector<16x8xf32>, vector<8x128xf32>, vector<16x128xf32> -> vector<16x128xf32>
    %c0_3 = arith.constant 0 : index
    %c0_4 = arith.constant 0 : index
    %8 = vector.load %arg3[%c0_3, %c0_4] : memref<16x128xf32, #tpu.memory_space<vmem>>, vector<16x128xf32>
    tpu.vector_store %arg3[%c0_3, %c0_4], %7 {strides = array<i32>} : memref<16x128xf32, #tpu.memory_space<vmem>>, vector<16x128xf32>,
    return
  }
  func.func @transform_0(%arg0: i32) -> (i32, i32) {
    %c0_i32 = arith.constant 0 : i32
    %c0_i32_0 = arith.constant 0 : i32
    return %arg0, %c0_i32 : i32, i32
  }
  func.func @transform_1(%arg0: i32) -> (i32, i32) {
    %c0_i32 = arith.constant 0 : i32
    %c0_i32_0 = arith.constant 0 : i32
    %c0_i32_1 = arith.constant 0 : i32
    return %c0_i32, %c0_i32_0 : i32, i32
  }
  func.func @transform_2(%arg0: i32) -> (i32, i32) {
    %c0_i32 = arith.constant 0 : i32
    %c0_i32_0 = arith.constant 0 : i32
    return %arg0, %c0_i32 : i32, i32
  }
}

</mosaic_0001>

<llo_original>
// kernel: tpu_custom_call.1
$region0: #{tpu_custom_call.1}
  #allocation0 [shape = 'u32[]', space=smem, size = 0x4, offset = 0x4, fixed_abs, tag = 'smem constant byte address 0x4 - core index']
  #allocation1 [shape = 'u32[144,128]{1,0:T(1,128)}', space=vmem, size = 0x12000, scoped, tag = 'internal scratch']
  %s0 = inlined_call_operand.vmem [shape: s32[16,1], index: 0, kind: input, shape index: {}]
  %s1 = inlined_call_operand.vmem [shape: f32[8,128], index: 1, kind: input, shape index: {}]
  %s2 = inlined_call_operand.hbm [shape: f32[16,128], index: 2, kind: output, shape index: {}]
  %s3 = sld [smem:[#allocation0]]
  $region18: #{tpu_custom_call.1} parent=0
    _
  %s5 = ssub.s32 1, %s3
  %s6 = scalar_select 0, %s5, %s3
  $region1: #{tpu_custom_call.1} parent=0
    #allocation2 [shape = 'u8[8192]{0}', space=vmem, size = 0x2000, scoped, tag = 'output window, operand 0, single buffered']
    #allocation3 [shape = 's32[1]{0}', space=sflag, size = 0x4, scoped, tag = 'scoped memory for tpu_custom_call.1']
    %7 = vsyncpa [#allocation3], 0
    // Predicated region
    $region2: #{tpu_custom_call.1} parent=1 // pred_check
      _
    $region3: #{tpu_custom_call.1} parent=1 // pred_check_branch
      %9 = sbr.rel (0) target = $region5
    $region4: #{tpu_custom_call.1} parent=1 // pred_region
      _
    $region5: #{tpu_custom_call.1} parent=1 // pred_fallthru
      _
    // Predicated region
    $region6: #{tpu_custom_call.1} parent=1 // pred_check
      _
    $region7: #{tpu_custom_call.1} parent=1 // pred_check_branch
      %11 = sbr.rel (0) target = $region9
    $region8: #{tpu_custom_call.1} parent=1 // pred_region
      _
    $region9: #{tpu_custom_call.1} parent=1 // pred_fallthru
      _
    %v12 = vld [vmem:[%s0] sm:$0xff]
    %v13 = vld [vmem:[%s0 + $0x8] sm:$0xff]
    %v14 = vlaneseq
    %v15 = vand.u32 %v14, 127
    %16 = vset.pattern.permute.xlu0 0
    %17 = vperm.xlu0 %16, %v12
    %v18 = vpop.permute.xlu0 %17
    %19 = vset.pattern.permute.xlu0 0
    %20 = vperm.xlu0 %19, %v13
    %v21 = vpop.permute.xlu0 %20
    %vm22 = vcmp.eq.s32.totalorder %v15, %v18
    %vm23 = vcmp.eq.s32.totalorder %v15, %v21
    %v24 = vsel %vm22, 1, 0
    %v25 = vsel %vm23, 1, 0
    %v26 = vcvt.s32.f32 %v24
    %v27 = vcvt.s32.f32 %v25
    %v28 = vld [vmem:[%s1] sm:$0xff]
    %vm29 = vcmask 64512
    %v31 = vsel %vm29, %v26, 0
    %v34 = vsel %vm29, %v27, 0
    %36 = vmatprep.subr.mxu0 0.0
    %37 = vmatpush1.msra.mxu0 0.0
    %38 = vmatprep.subr.mxu0 0.0
    %39 = vmatpush1.msra.mxu0 0.0
    %40 = vmatprep.subr.mxu0 0.0
    %41 = vmatpush1.msra.mxu0 0.0
    %42 = vmatprep.subr.mxu0 0.0
    %43 = vmatpush1.msra.mxu0 0.0
    %44 = vmatprep.subr.mxu0 0.0
    %45 = vmatpush1.msra.mxu0 0.0
    %46 = vmatprep.subr.mxu0 0.0
    %47 = vmatpush1.msra.mxu0 0.0
    %48 = vmatprep.subr.mxu0 0.0
    %49 = vmatpush1.msra.mxu0 0.0
    %50 = vmatprep.subr.mxu0 0.0
    %51 = vmatpush1.msra.mxu0 0.0
    %52 = vmatprep.subr.mxu0 0.0
    %53 = vmatpush1.msra.mxu0 0.0
    %54 = vmatprep.subr.mxu0 0.0
    %55 = vmatpush1.msra.mxu0 0.0
    %56 = vmatprep.subr.mxu0 0.0
    %57 = vmatpush1.msra.mxu0 0.0
    %58 = vmatprep.subr.mxu0 0.0
    %59 = vmatpush1.msra.mxu0 0.0
    %60 = vmatprep.subr.mxu0 0.0
    %61 = vmatpush1.msra.mxu0 0.0
    %62 = vmatprep.subr.mxu0 0.0
    %63 = vmatpush1.msra.mxu0 0.0
    %64 = vmatprep.subr.mxu0 0.0
    %65 = vmatpush1.msra.mxu0 0.0
    %66 = vmatprep.subr.mxu0 0.0
    %67 = vmatpush1.msra.mxu0 %v28
    %68 = vmatprep.subr.mxu0 0.0
    %69 = vmatpush2.msra.mxu0 0.0
    %70 = vmatprep.subr.mxu0 0.0
    %71 = vmatpush2.msra.mxu0 0.0
    %72 = vmatprep.subr.mxu0 0.0
    %73 = vmatpush2.msra.mxu0 0.0
    %74 = vmatprep.subr.mxu0 0.0
    %75 = vmatpush2.msra.mxu0 0.0
    %76 = vmatprep.subr.mxu0 0.0
    %77 = vmatpush2.msra.mxu0 0.0
    %78 = vmatprep.subr.mxu0 0.0
    %79 = vmatpush2.msra.mxu0 0.0
    %80 = vmatprep.subr.mxu0 0.0
    %81 = vmatpush2.msra.mxu0 0.0
    %82 = vmatprep.subr.mxu0 0.0
    %83 = vmatpush2.msra.mxu0 0.0
    %84 = vmatprep.subr.mxu0 0.0
    %85 = vmatpush2.msra.mxu0 0.0
    %86 = vmatprep.subr.mxu0 0.0
    %87 = vmatpush2.msra.mxu0 0.0
    %88 = vmatprep.subr.mxu0 0.0
    %89 = vmatpush2.msra.mxu0 0.0
    %90 = vmatprep.subr.mxu0 0.0
    %91 = vmatpush2.msra.mxu0 0.0
    %92 = vmatprep.subr.mxu0 0.0
    %93 = vmatpush2.msra.mxu0 0.0
    %94 = vmatprep.subr.mxu0 0.0
    %95 = vmatpush2.msra.mxu0 0.0
    %96 = vmatprep.subr.mxu0 0.0
    %97 = vmatpush2.msra.mxu0 0.0
    %98 = vmatprep.subr.mxu0 0.0
    %99 = vmatpush2.msra.mxu0 0.0
    %100 = vmatprep.mubr.f32.mxu0 0.0
    %101 = vmatmul.mubr.f32.gmra.mxu0 %v31
    %v102 = vpop.f32.mrf.mxu0
    %v103 = vadd.f32 0.0, %v102
    %v104 = vpop.f32.mrf.mxu0
    %105 = vmatprep.mubr.f32.mxu0 0.0
    %106 = vmatmul.mubr.f32.gmra.mxu0 %v34
    %v107 = vpop.f32.mrf.mxu0
    %v108 = vadd.f32 0.0, %v107
    %v109 = vpop.f32.mrf.mxu0
    %110 = vdwg.mxu0
    %111 = vst [vmem:[#allocation2] sm:$0xff] %v103
    %112 = vst [vmem:[#allocation2 + $0x8] sm:$0xff] %v108
    // Predicated region
    $region10: #{tpu_custom_call.1} parent=1 // pred_check
      _
    $region11: #{tpu_custom_call.1} parent=1 // pred_check_branch
      %114 = sbr.rel (0) target = $region13
    $region12: #{tpu_custom_call.1} parent=1 // pred_region
      %s116 = ssub.s32 256, 256
      %117 = vsyncadd [#allocation3], %s116
      %s118 = sshll.u32 [#allocation2], 4
      %s119 = int_to_ptr.vmem [resolvable:$true] %s118
      %124 = dma.vmem_to_hbm [thread:$0]  %s119, 256, %s2, [#allocation3], 128, 128, 8
    $region13: #{tpu_custom_call.1} parent=1 // pred_fallthru
      _
    // Predicated region
    $region14: #{tpu_custom_call.1} parent=1 // pred_check
      _
    $region15: #{tpu_custom_call.1} parent=1 // pred_check_branch
      %126 = sbr.rel (0) target = $region17
    $region16: #{tpu_custom_call.1} parent=1 // pred_region
      %127 = dma.done [#allocation3], 256
    $region17: #{tpu_custom_call.1} parent=1 // pred_fallthru
      _
    %128 = vsyncpa [#allocation3], 1

</llo_original>
